<compile_context>
chip_gen: v5e
topology: v5e:2x2
jax: 0.10.0
libtpu: 0.0.40
codegen_flags: <defaults>
</compile_context>

<pallas_src>
import functools

import jax
import jax.numpy as jnp
from jax.experimental import pallas as pl
from jax.experimental.pallas import tpu as pltpu


# ---------------------------------------------------------------------------
# Tiling helper
# ---------------------------------------------------------------------------

def _pick_row_tile(rows, feat, *, bytes_per_elem=4,
                   target_block_bytes=2 << 20, min_grid_steps=8):
    """Row tile: 8-aligned, ~2 MiB per (tr, feat) block, plenty of grid steps.

    Targets the measured HBM-roofline sweet spot (~1-4 MiB blocks) but never
    fewer than `min_grid_steps` grid steps when `rows` allows it, so megacore
    sharding gets >= a few steps per TensorCore and the DMA double buffer
    always has a next block to prefetch.  Always returns a multiple of 8, or
    the full row extent when rows < 8 (a legal full-extent block).
    """
    if rows <= 8:
        return rows
    cap_vmem = max(8, (target_block_bytes // (feat * bytes_per_elem)) // 8 * 8)
    cap_grid = max(8, (rows // min_grid_steps) // 8 * 8)
    return min(cap_vmem, cap_grid, (rows // 8) * 8)


# ---------------------------------------------------------------------------
# Kernels
# ---------------------------------------------------------------------------

def _ln_rows(x, g, b, *, feat, eps):
    """LayerNorm over the last (lane) axis, PyTorch semantics, f32 compute."""
    mean = jnp.mean(x, axis=-1, keepdims=True)            # XLU cross-lane reduce
    xc = x - mean
    # torch.std defaults to the unbiased estimator (divisor D-1).
    var = jnp.sum(xc * xc, axis=-1, keepdims=True) * (1.0 / (feat - 1))
    d = jnp.sqrt(var) + eps
    inv = pl.reciprocal(d, approx=True)                    # EUP slot (free-ish)
    inv = inv * (2.0 - d * inv)                            # one Newton step -> f32 accurate
    return g * (xc * inv) + b


def _layernorm_kernel(x_ref, g_ref, b_ref, o_ref, *, feat, eps):
    """x_ref: (TR, D) rows x features (lane-dense); g/b: (1, D); o_ref: (TR, D)."""
    x = x_ref[...].astype(jnp.float32)
    y = _ln_rows(x, g_ref[...].astype(jnp.float32),
                 b_ref[...].astype(jnp.float32), feat=feat, eps=eps)
    o_ref[...] = y.astype(o_ref.dtype)


def _fused_ln_linear_res_kernel(x_ref, g_ref, b_ref, w_ref, xr_ref, o_ref,
                                *, feat, eps, relu):
    """Fused LayerNorm + matmul (+ReLU) + residual add.

    x_ref : (TM, D)  full-feature row tile (needed for LN stats)
    w_ref : (D, TN)  weight column tile
    xr_ref: (TM, TN) residual slice of x matching the output tile
    o_ref : (TM, TN)
    """
    x = x_ref[...].astype(jnp.float32)
    y = _ln_rows(x, g_ref[...].astype(jnp.float32),
                 b_ref[...].astype(jnp.float32), feat=feat, eps=eps)
    z = jnp.dot(y.astype(w_ref.dtype), w_ref[...],
                preferred_element_type=jnp.float32)        # MXU
    if relu:
        z = jnp.maximum(z, 0.0)
    o_ref[...] = (xr_ref[...].astype(jnp.float32) + z).astype(o_ref.dtype)


# ---------------------------------------------------------------------------
# Wrappers
# ---------------------------------------------------------------------------

def layernorm_pallas(x2d, a_2, b_2, *, eps=1e-6, out_dtype=None):
    """x2d: (rows, D).  Returns a_2*(x-mean)/(std+eps)+b_2 per row."""
    rows, feat = x2d.shape
    out_dtype = x2d.dtype if out_dtype is None else out_dtype
    tr = _pick_row_tile(rows, feat)
    kernel = functools.partial(_layernorm_kernel, feat=feat, eps=eps)
    return pl.pallas_call(
        kernel,
        out_shape=jax.ShapeDtypeStruct((rows, feat), out_dtype),
        grid=(pl.cdiv(rows, tr),),
        in_specs=[
            pl.BlockSpec((tr, feat), lambda i: (i, 0)),   # x rows (lane-dense)
            pl.BlockSpec((1, feat), lambda i: (0, 0)),    # a_2 (grid-invariant)
            pl.BlockSpec((1, feat), lambda i: (0, 0)),    # b_2 (grid-invariant)
        ],
        out_specs=pl.BlockSpec((tr, feat), lambda i: (i, 0)),
        compiler_params=pltpu.CompilerParams(
            dimension_semantics=("parallel",),
            vmem_limit_bytes=32 << 20),
    )(x2d, a_2.reshape(1, feat), b_2.reshape(1, feat))


def sublayer_connection_forward(x, a_2, b_2, sublayer, *, eps=1e-6,
                                norm_out_dtype=None):
    """Generic SublayerConnection.forward: x + sublayer(LayerNorm(x)).

    x        : (..., D) (e.g. (B, S, D))
    a_2, b_2 : (D,) LayerNorm affine parameters
    sublayer : arbitrary JAX callable mapping (..., D) -> (..., D)
    norm_out_dtype : e.g. jnp.bfloat16 to halve the LN write stream and feed
                     the downstream matmul at full MXU rate (stats stay f32).
    """
    orig_shape = x.shape
    feat = orig_shape[-1]
    x2d = x.reshape(-1, feat)                 # free reshape, no transpose
    y2d = layernorm_pallas(x2d, a_2, b_2, eps=eps, out_dtype=norm_out_dtype)
    z = sublayer(y2d.reshape(orig_shape))     # arbitrary sublayer, plain JAX
    # Residual add left to XLA so it fuses into the sublayer's epilogue
    # (no third HBM-bound pass, no extra kernel launch).
    return x + z.astype(x.dtype)


def sublayer_connection_fused_linear(x, a_2, b_2, W, *, activation="relu",
                                     eps=1e-6):
    """Fully fused path for sublayer(t) = act(t @ W): one Pallas kernel does
    LayerNorm + matmul + activation + residual, so y and z never hit HBM."""
    orig_shape = x.shape
    feat = orig_shape[-1]
    k_in, n_out = W.shape
    assert k_in == feat and n_out == feat, "residual requires square weight"
    x2d = x.reshape(-1, feat)
    rows = x2d.shape[0]

    tm = _pick_row_tile(rows, feat)
    tn = n_out if n_out <= 512 else 512       # lane-dense, multiple of 128
    grid = (pl.cdiv(rows, tm), pl.cdiv(n_out, tn))

    kernel = functools.partial(_fused_ln_linear_res_kernel, feat=feat, eps=eps,
                               relu=(activation == "relu"))
    out2d = pl.pallas_call(
        kernel,
        out_shape=jax.ShapeDtypeStruct((rows, n_out), x.dtype),
        grid=grid,
        in_specs=[
            pl.BlockSpec((tm, feat), lambda i, j: (i, 0)),   # x rows (LN stats)
            pl.BlockSpec((1, feat), lambda i, j: (0, 0)),    # a_2
            pl.BlockSpec((1, feat), lambda i, j: (0, 0)),    # b_2
            pl.BlockSpec((feat, tn), lambda i, j: (0, j)),   # W column tile
            pl.BlockSpec((tm, tn), lambda i, j: (i, j)),     # x residual tile
        ],
        out_specs=pl.BlockSpec((tm, tn), lambda i, j: (i, j)),
        compiler_params=pltpu.CompilerParams(
            dimension_semantics=("parallel", "parallel"),
            vmem_limit_bytes=32 << 20),
    )(x2d, a_2.reshape(1, feat), b_2.reshape(1, feat), W, x2d)
    return out2d.reshape(orig_shape)


# ---------------------------------------------------------------------------
# Pure-JAX reference (same math, no Pallas)
# ---------------------------------------------------------------------------

def reference_forward(x, a_2, b_2, sublayer, eps=1e-6):
    mean = jnp.mean(x, axis=-1, keepdims=True)
    std = jnp.std(x, axis=-1, keepdims=True, ddof=1)   # unbiased, like torch
    y = a_2 * (x - mean) / (std + eps) + b_2
    return x + sublayer(y)


# ---------------------------------------------------------------------------
# Demo / self-test
# ---------------------------------------------------------------------------

if __name__ == "__main__":
    key = jax.random.PRNGKey(0)
    k_x, k_g, k_b, k_w = jax.random.split(key, 4)

    B, S, D = 2, 256, 256          # rows = 512 -> row tile 64, 8 parallel steps

    x = jax.random.normal(k_x, (B, S, D), jnp.float32)
    a_2 = 1.0 + 0.1 * jax.random.normal(k_g, (D,), jnp.float32)
    b_2 = 0.1 * jax.random.normal(k_b, (D,), jnp.float32)

    # Example sublayer: position-wise linear + ReLU.
    W = 0.05 * jax.random.normal(k_w, (D, D), jnp.float32)
    sublayer = lambda t: jax.nn.relu(jnp.dot(t, W))

    ref = reference_forward(x, a_2, b_2, sublayer)

    # 1) Generic path: Pallas LayerNorm + arbitrary JAX sublayer + fused add.
    out = jax.block_until_ready(sublayer_connection_forward(x, a_2, b_2, sublayer))
    assert out.shape == (B, S, D), out.shape
    assert jnp.allclose(out, ref, atol=1e-4, rtol=1e-4), \
        float(jnp.max(jnp.abs(out - ref)))

    # 2) Generic path with bf16 LayerNorm output (halved LN write traffic).
    out_bf = jax.block_until_ready(
        sublayer_connection_forward(x, a_2, b_2, sublayer,
                                    norm_out_dtype=jnp.bfloat16))
    assert jnp.allclose(out_bf, ref, atol=2e-2, rtol=2e-2), \
        float(jnp.max(jnp.abs(out_bf - ref)))

    # 3) Fully fused LN + matmul + ReLU + residual (single Pallas kernel).
    #    Looser tolerance: in-kernel MXU f32 matmul may use a different pass
    #    decomposition than the XLA reference dot.
    out_fused = jax.block_until_ready(
        sublayer_connection_fused_linear(x, a_2, b_2, W, activation="relu"))
    assert out_fused.shape == (B, S, D), out_fused.shape
    assert jnp.allclose(out_fused, ref, atol=2e-2, rtol=2e-2), \
        float(jnp.max(jnp.abs(out_fused - ref)))

    print("KERNEL_OK")
</pallas_src>

<mosaic_0001>
module attributes {stable_mosaic.version = 11 : i64} {
  func.func @_layernorm_kernel(%arg0: i32, %arg1: memref<64x256xf32, #tpu.memory_space<vmem>>, %arg2: memref<1x256xf32, #tpu.memory_space<vmem>>, %arg3: memref<1x256xf32, #tpu.memory_space<vmem>>, %arg4: memref<64x256xf32, #tpu.memory_space<vmem>>) attributes {dimension_semantics = [#tpu.dimension_semantics<parallel>], iteration_bounds = array<i64: 8>, scalar_prefetch = 0 : i64, scratch_operands = 0 : i64, tpu.core_type = #tpu.core_type<tc>, window_params = [{transform_indices = @transform_0, window_bounds = array<i64: 64, 256>}, {pipeline_mode = #tpu.pipeline_mode<synchronous>, transform_indices = @transform_1, window_bounds = array<i64: 1, 256>}, {pipeline_mode = #tpu.pipeline_mode<synchronous>, transform_indices = @transform_2, window_bounds = array<i64: 1, 256>}, {transform_indices = @transform_3, window_bounds = array<i64: 64, 256>}]} {
    %c0 = arith.constant 0 : index
    %c0_0 = arith.constant 0 : index
    %0 = vector.load %arg1[%c0, %c0_0] : memref<64x256xf32, #tpu.memory_space<vmem>>, vector<64x256xf32>
    %c0_1 = arith.constant 0 : index
    %c0_2 = arith.constant 0 : index
    %1 = vector.load %arg2[%c0_1, %c0_2] : memref<1x256xf32, #tpu.memory_space<vmem>>, vector<1x256xf32>
    %c0_3 = arith.constant 0 : index
    %c0_4 = arith.constant 0 : index
    %2 = vector.load %arg3[%c0_3, %c0_4] : memref<1x256xf32, #tpu.memory_space<vmem>>, vector<1x256xf32>
    %cst = arith.constant dense<0.000000e+00> : vector<64xf32>
    %3 = vector.multi_reduction <add>, %0, %cst [1] : vector<64x256xf32> to vector<64xf32>
    %4 = vector.shape_cast %3 : vector<64xf32> to vector<64x1xf32>
    %cst_5 = arith.constant 2.560000e+02 : f32
    %5 = vector.broadcast %cst_5 : f32 to vector<64x1xf32>
    %6 = arith.divf %4, %5 : vector<64x1xf32>
    %7 = vector.broadcast %6 : vector<64x1xf32> to vector<64x256xf32>
    %8 = arith.subf %0, %7 : vector<64x256xf32>
    %9 = arith.mulf %8, %8 : vector<64x256xf32>
    %cst_6 = arith.constant dense<0.000000e+00> : vector<64xf32>
    %10 = vector.multi_reduction <add>, %9, %cst_6 [1] : vector<64x256xf32> to vector<64xf32>
    %11 = vector.shape_cast %10 : vector<64xf32> to vector<64x1xf32>
    %cst_7 = arith.constant 0.00392156886 : f32
    %12 = vector.broadcast %cst_7 : f32 to vector<64x1xf32>
    %13 = arith.mulf %11, %12 : vector<64x1xf32>
    %14 = math.sqrt %13 : vector<64x1xf32>
    %cst_8 = arith.constant 9.99999997E-7 : f32
    %15 = vector.broadcast %cst_8 : f32 to vector<64x1xf32>
    %16 = arith.addf %14, %15 : vector<64x1xf32>
    %17 = tpu.reciprocal %16 {approx = true} : vector<64x1xf32> -> vector<64x1xf32>
    %18 = arith.mulf %16, %17 : vector<64x1xf32>
    %cst_9 = arith.constant 2.000000e+00 : f32
    %19 = vector.broadcast %cst_9 : f32 to vector<64x1xf32>
    %20 = arith.subf %19, %18 : vector<64x1xf32>
    %21 = arith.mulf %17, %20 : vector<64x1xf32>
    %22 = vector.broadcast %21 : vector<64x1xf32> to vector<64x256xf32>
    %23 = arith.mulf %8, %22 : vector<64x256xf32>
    %24 = vector.broadcast %1 : vector<1x256xf32> to vector<64x256xf32>
    %25 = arith.mulf %24, %23 : vector<64x256xf32>
    %26 = vector.broadcast %2 : vector<1x256xf32> to vector<64x256xf32>
    %27 = arith.addf %25, %26 : vector<64x256xf32>
    %c0_10 = arith.constant 0 : index
    %c0_11 = arith.constant 0 : index
    %28 = vector.load %arg4[%c0_10, %c0_11] : memref<64x256xf32, #tpu.memory_space<vmem>>, vector<64x256xf32>
    tpu.vector_store %arg4[%c0_10, %c0_11], %27 {strides = array<i32>} : memref<64x256xf32, #tpu.memory_space<vmem>>, vector<64x256xf32>,
    return
  }
  func.func @transform_0(%arg0: i32) -> (i32, i32) {
    %c0_i32 = arith.constant 0 : i32
    %c0_i32_0 = arith.constant 0 : i32
    return %arg0, %c0_i32 : i32, i32
  }
  func.func @transform_1(%arg0: i32) -> (i32, i32) {
    %c0_i32 = arith.constant 0 : i32
    %c0_i32_0 = arith.constant 0 : i32
    %c0_i32_1 = arith.constant 0 : i32
    return %c0_i32, %c0_i32_0 : i32, i32
  }
  func.func @transform_2(%arg0: i32) -> (i32, i32) {
    %c0_i32 = arith.constant 0 : i32
    %c0_i32_0 = arith.constant 0 : i32
    %c0_i32_1 = arith.constant 0 : i32
    return %c0_i32, %c0_i32_0 : i32, i32
  }
  func.func @transform_3(%arg0: i32) -> (i32, i32) {
    %c0_i32 = arith.constant 0 : i32
    %c0_i32_0 = arith.constant 0 : i32
    return %arg0, %c0_i32 : i32, i32
  }
}

</mosaic_0001>

<llo_original>
// kernel: tpu_custom_call.1
$region0: #{tpu_custom_call.1}
  #allocation0 [shape = 'u32[]', space=smem, size = 0x4, offset = 0x4, fixed_abs, tag = 'smem constant byte address 0x4 - core index']
  #allocation1 [shape = 'u32[72,128]{1,0:T(1,128)}', space=vmem, size = 0x9000, scoped, tag = 'internal scratch']
  %s0 = inlined_call_operand.hbm [shape: f32[512,256], index: 0, kind: input, shape index: {}]
  %s1 = inlined_call_operand.hbm [shape: f32[1,256], index: 1, kind: input, shape index: {}]
  %s2 = inlined_call_operand.hbm [shape: f32[1,256], index: 2, kind: input, shape index: {}]
  %s3 = inlined_call_operand.hbm [shape: f32[512,256], index: 3, kind: output, shape index: {}]
  %s4 = sld [smem:[#allocation0]]
  $region57: #{tpu_custom_call.1} parent=0
    _
  %s6 = ssub.s32 1, %s4
  %s7 = scalar_select 0, %s6, %s4
  $region1: #{tpu_custom_call.1} parent=0
    #allocation2 [shape = 'u8[131072]{0}', space=vmem, size = 0x20000, scoped, tag = 'input window, operand 0']
    #allocation3 [shape = 's32[2]{0}', space=sflag, size = 0x8, scoped, tag = 'scoped memory for tpu_custom_call.1']
    #allocation4 [shape = 's32[2]{0}', space=sflag, size = 0x8, scoped, tag = 'scoped memory for tpu_custom_call.1']
    #allocation5 [shape = 'u8[1024]{0}', space=vmem, size = 0x400, scoped, tag = 'input window, operand 1, single buffered']
    #allocation6 [shape = 's32[1]{0}', space=sflag, size = 0x4, scoped, tag = 'scoped memory for tpu_custom_call.1']
    #allocation7 [shape = 'u8[1024]{0}', space=vmem, size = 0x400, scoped, tag = 'input window, operand 2, single buffered']
    #allocation8 [shape = 'u8[131072]{0}', space=vmem, size = 0x20000, scoped, tag = 'output window, operand 0']
    %8 = vsyncpa [#allocation3], 0
    %s9 = scalar_lea.sflag [#allocation3], 1
    %10 = vsyncpa %s9, 0
    %11 = vsyncpa [#allocation6], 0
    %12 = vsyncpa [#allocation4], 0
    %s13 = scalar_lea.sflag [#allocation4], 1
    %14 = vsyncpa %s13, 0
    loop: start=0, step=1, limit=10
    $region2: #{tpu_custom_call.1} parent=1 // loop_pre_header
      _
    $region3: #{tpu_custom_call.1} parent=1 // loop_header
      %s16 = sphi 0, %s20
      %p17 = scmp.ge.s32.totalorder %s16, 10
      %s26 = sphi 0, %s28
      %s29 = sphi 0, %s26
      %s30 = sphi 0, %s29
      %s46 = sphi 0, %s30
      %s50 = sphi 0, %s50
      %s52 = sphi 0, %s50
      %s53 = sphi 0, %s52
      %s67 = sphi 0, %s53
      %s71 = sphi 0, %s71
      %s73 = sphi 0, %s71
      %s74 = sphi 0, %s73
      %s88 = sphi 0, %s74
      %s94 = sphi 0, %s96
      %s97 = sphi 0, %s94
      %s98 = sphi 0, %s97
      %s114 = sphi 0, %s98
    $region4: #{tpu_custom_call.1} parent=1 // loop_header_branch
      %19 = sbr.rel (%p17) target = $region8
    $region5: #{tpu_custom_call.1} parent=1 // loop_body
      %s21 = ssub.s32 %s16, 1
      %s22 = ssub.s32 %s16, 2
      %s23 = sadd.s32 %s16, 1
      %s24 = ssub.s32 %s16, %s23
      %p25 = scmp.eq.s32.totalorder %s24, 0
      %s27 = sadd.s32 %s26, 1
      %s28 = scalar_select %p25, %s26, %s27
      %p31 = pneg %p25
      %p32 = scmp.eq.s32.totalorder %s16, 7
      %p33 = por %p31, %p32
      %p34 = scmp.ne.s32.totalorder %s26, %s29
      %p35 = scmp.eq.s32.totalorder %s16, 0
      %p36 = por %p34, %p35
      %p37 = scmp.ne.s32.totalorder %s26, %s29
      %p38 = scmp.eq.s32.totalorder %s21, 7
      %p39 = por %p37, %p38
      %p40 = scmp.ne.s32.totalorder %s29, %s30
      %p41 = scmp.eq.s32.totalorder %s21, 0
      %p42 = por %p40, %p41
      %p43 = scmp.ne.s32.totalorder %s29, %s30
      %p44 = scmp.eq.s32.totalorder %s22, 7
      %p45 = por %p43, %p44
      %p47 = scmp.ne.s32.totalorder %s30, %s46
      %p48 = scmp.eq.s32.totalorder %s22, 0
      %p49 = por %p47, %p48
      %s51 = sadd.s32 %s50, 1
      %p54 = scmp.eq.s32.totalorder %s16, 7
      %p55 = scmp.ne.s32.totalorder %s50, %s52
      %p56 = scmp.eq.s32.totalorder %s16, 0
      %p57 = por %p55, %p56
      %p58 = scmp.ne.s32.totalorder %s50, %s52
      %p59 = scmp.eq.s32.totalorder %s21, 7
      %p60 = por %p58, %p59
      %p61 = scmp.ne.s32.totalorder %s52, %s53
      %p62 = scmp.eq.s32.totalorder %s21, 0
      %p63 = por %p61, %p62
      %p64 = scmp.ne.s32.totalorder %s52, %s53
      %p65 = scmp.eq.s32.totalorder %s22, 7
      %p66 = por %p64, %p65
      %p68 = scmp.ne.s32.totalorder %s53, %s67
      %p69 = scmp.eq.s32.totalorder %s22, 0
      %p70 = por %p68, %p69
      %s72 = sadd.s32 %s71, 1
      %p75 = scmp.eq.s32.totalorder %s16, 7
      %p76 = scmp.ne.s32.totalorder %s71, %s73
      %p77 = scmp.eq.s32.totalorder %s16, 0
      %p78 = por %p76, %p77
      %p79 = scmp.ne.s32.totalorder %s71, %s73
      %p80 = scmp.eq.s32.totalorder %s21, 7
      %p81 = por %p79, %p80
      %p82 = scmp.ne.s32.totalorder %s73, %s74
      %p83 = scmp.eq.s32.totalorder %s21, 0
      %p84 = por %p82, %p83
      %p85 = scmp.ne.s32.totalorder %s73, %s74
      %p86 = scmp.eq.s32.totalorder %s22, 7
      %p87 = por %p85, %p86
      %p89 = scmp.ne.s32.totalorder %s74, %s88
      %p90 = scmp.eq.s32.totalorder %s22, 0
      %p91 = por %p89, %p90
      %s92 = ssub.s32 %s16, %s23
      %p93 = scmp.eq.s32.totalorder %s92, 0
      %s95 = sadd.s32 %s94, 1
      %s96 = scalar_select %p93, %s94, %s95
      %p99 = pneg %p93
      %p100 = scmp.eq.s32.totalorder %s16, 7
      %p101 = por %p99, %p100
      %p102 = scmp.ne.s32.totalorder %s94, %s97
      %p103 = scmp.eq.s32.totalorder %s16, 0
      %p104 = por %p102, %p103
      %p105 = scmp.ne.s32.totalorder %s94, %s97
      %p106 = scmp.eq.s32.totalorder %s21, 7
      %p107 = por %p105, %p106
      %p108 = scmp.ne.s32.totalorder %s97, %s98
      %p109 = scmp.eq.s32.totalorder %s21, 0
      %p110 = por %p108, %p109
      %p111 = scmp.ne.s32.totalorder %s97, %s98
      %p112 = scmp.eq.s32.totalorder %s22, 7
      %p113 = por %p111, %p112
      %p115 = scmp.ne.s32.totalorder %s98, %s114
      %p116 = scmp.eq.s32.totalorder %s22, 0
      %p117 = por %p115, %p116
      %p118 = scmp.le.s32.totalorder 1, %s16
      %p119 = scmp.lt.s32.totalorder %s16, 9
      %p120 = pnand %p118, %p119
      %p121 = pneg %p120
      // Predicated region
      $region9: #{tpu_custom_call.1} parent=5 // pred_check
        _
      $region10: #{tpu_custom_call.1} parent=5 // pred_check_branch
        %123 = sbr.rel (%p120) target = $region12
      $region11: #{tpu_custom_call.1} parent=5 // pred_region
        %s124 = ssub.s32 %s16, 1
        // Predicated region
        $region13: #{tpu_custom_call.1} parent=11 // pred_check
          %p125 = pneg %p63
        $region14: #{tpu_custom_call.1} parent=11 // pred_check_branch
          %127 = sbr.rel (%p125) target = $region16
        $region15: #{tpu_custom_call.1} parent=11 // pred_region
          %129 = vsyncadd [#allocation6], 0
          %s131 = sshll.u32 %s1, 4
          %s132 = int_to_ptr.hbm [resolvable:$true] %s131
          %s133 = sshll.u32 [#allocation5], 4
          %s134 = int_to_ptr.vmem [resolvable:$true] %s133
          %136 = dma.hbm_to_vmem [thread:$0]  %s132, 32, %s134, [#allocation6]
        $region16: #{tpu_custom_call.1} parent=11 // pred_fallthru
          _
        // Predicated region
        $region17: #{tpu_custom_call.1} parent=11 // pred_check
          %p137 = pneg %p84
        $region18: #{tpu_custom_call.1} parent=11 // pred_check_branch
          %139 = sbr.rel (%p137) target = $region20
        $region19: #{tpu_custom_call.1} parent=11 // pred_region
          %141 = vsyncadd [#allocation6], 0
          %s143 = sshll.u32 %s2, 4
          %s144 = int_to_ptr.hbm [resolvable:$true] %s143
          %s145 = sshll.u32 [#allocation7], 4
          %s146 = int_to_ptr.vmem [resolvable:$true] %s145
          %148 = dma.hbm_to_vmem [thread:$0]  %s144, 32, %s146, [#allocation6]
        $region20: #{tpu_custom_call.1} parent=11 // pred_fallthru
          _
      $region12: #{tpu_custom_call.1} parent=5 // pred_fallthru
        _
      %p149 = scmp.lt.s32.totalorder %s16, 8
      // Predicated region
      $region21: #{tpu_custom_call.1} parent=5 // pred_check
        %p150 = pneg %p149
      $region22: #{tpu_custom_call.1} parent=5 // pred_check_branch
        %152 = sbr.rel (%p150) target = $region24
      $region23: #{tpu_custom_call.1} parent=5 // pred_region
        // Predicated region
        $region25: #{tpu_custom_call.1} parent=23 // pred_check
          %p153 = pneg %p36
        $region26: #{tpu_custom_call.1} parent=23 // pred_check_branch
          %155 = sbr.rel (%p153) target = $region28
        $region27: #{tpu_custom_call.1} parent=23 // pred_region
          %s156 = sand.u32 %s26, 1
          %s157 = scalar_lea.sflag [#allocation3], %s156
          %s158 = sand.u32 %s26, 1
          %s159 = smul.addr %s158, 128
          %s160 = scalar_lea.vmem [#allocation2], %s159
          %s161 = smul.u32 8, %s16
          %163 = vsyncadd %s157, 0
          %s164 = smul.addr %s161, 2
          %s165 = smul.addr %s164, 8
          %s166 = scalar_lea.hbm %s0, %s165
          %s167 = sshll.u32 %s166, 4
          %s168 = int_to_ptr.hbm [resolvable:$true] %s167
          %s169 = sshll.u32 %s160, 4
          %s170 = int_to_ptr.vmem [resolvable:$true] %s169
          %175 = dma.hbm_to_vmem [thread:$0]  %s168, 2048, %s170, %s157, 256, 256, 16
        $region28: #{tpu_custom_call.1} parent=23 // pred_fallthru
          _
      $region24: #{tpu_custom_call.1} parent=5 // pred_fallthru
        _
      %p176 = scmp.le.s32.totalorder 1, %s16
      %p177 = scmp.lt.s32.totalorder %s16, 9
      %p178 = pnand %p176, %p177
      %p179 = pneg %p178
      // Predicated region
      $region29: #{tpu_custom_call.1} parent=5 // pred_check
        _
      $region30: #{tpu_custom_call.1} parent=5 // pred_check_branch
        %181 = sbr.rel (%p178) target = $region32
      $region31: #{tpu_custom_call.1} parent=5 // pred_region
        %s182 = ssub.s32 %s16, 1
        %s183 = sand.u32 %s29, 1
        %s184 = scalar_lea.sflag [#allocation3], %s183
        %s185 = sand.u32 %s29, 1
        %s186 = smul.addr %s185, 128
        %s187 = scalar_lea.vmem [#allocation2], %s186
        // Predicated region
        $region33: #{tpu_custom_call.1} parent=31 // pred_check
          %p188 = pneg %p42
        $region34: #{tpu_custom_call.1} parent=31 // pred_check_branch
          %190 = sbr.rel (%p188) target = $region36
        $region35: #{tpu_custom_call.1} parent=31 // pred_region
          %192 = dma.done %s184, 2048
        $region36: #{tpu_custom_call.1} parent=31 // pred_fallthru
          _
        // Predicated region
        $region37: #{tpu_custom_call.1} parent=31 // pred_check
          %p193 = pneg %p63
        $region38: #{tpu_custom_call.1} parent=31 // pred_check_branch
          %195 = sbr.rel (%p193) target = $region40
        $region39: #{tpu_custom_call.1} parent=31 // pred_region
          %197 = dma.done [#allocation6], 32
        $region40: #{tpu_custom_call.1} parent=31 // pred_fallthru
          _
        // Predicated region
        $region41: #{tpu_custom_call.1} parent=31 // pred_check
          %p198 = pneg %p84
        $region42: #{tpu_custom_call.1} parent=31 // pred_check_branch
          %200 = sbr.rel (%p198) target = $region44
        $region43: #{tpu_custom_call.1} parent=31 // pred_region
          %202 = dma.done [#allocation6], 32
        $region44: #{tpu_custom_call.1} parent=31 // pred_fallthru
          _
        %s203 = sand.u32 %s29, 1
        %s204 = scalar_lea.sflag [#allocation3], %s203
        %s205 = sand.u32 %s29, 1
        %s206 = smul.addr %s205, 128
        %s207 = scalar_lea.vmem [#allocation2], %s206
        %p208 = pneg %p42
        %p209 = pneg %p39
        %p210 = pneg %p63
        %p211 = pneg %p60
        %p212 = pneg %p84
        %p213 = pneg %p81
        %p214 = pneg %p110
        %p215 = pneg %p107
        %s216 = sand.u32 %s97, 1
        %s217 = scalar_lea.sflag [#allocation4], %s216
        %s218 = sand.u32 %s97, 1
        %s219 = smul.addr %s218, 128
        %s220 = scalar_lea.vmem [#allocation8], %s219
        %s221 = smul.u32 8, %s21
        %s222 = smul.u32 8, %s21
        %v223 = vld [vmem:[%s187] sm:$0xff]
        %v224 = vld [vmem:[%s187 + $0x8] sm:$0xff]
        %v225 = vld [vmem:[%s187 + $0x10] sm:$0xff]
        %v226 = vld [vmem:[%s187 + $0x18] sm:$0xff]
        %v227 = vld [vmem:[%s187 + $0x20] sm:$0xff]
        %v228 = vld [vmem:[%s187 + $0x28] sm:$0xff]
        %v229 = vld [vmem:[%s187 + $0x30] sm:$0xff]
        %v230 = vld [vmem:[%s187 + $0x38] sm:$0xff]
        %v231 = vld [vmem:[%s187 + $0x40] sm:$0xff]
        %v232 = vld [vmem:[%s187 + $0x48] sm:$0xff]
        %v233 = vld [vmem:[%s187 + $0x50] sm:$0xff]
        %v234 = vld [vmem:[%s187 + $0x58] sm:$0xff]
        %v235 = vld [vmem:[%s187 + $0x60] sm:$0xff]
        %v236 = vld [vmem:[%s187 + $0x68] sm:$0xff]
        %v237 = vld [vmem:[%s187 + $0x70] sm:$0xff]
        %v238 = vld [vmem:[%s187 + $0x78] sm:$0xff]
        %v239 = vld [vmem:[#allocation5] sm:$0x3]
        %v240 = vld [vmem:[#allocation7] sm:$0x3]
        %v241 = vadd.f32 %v223, %v224
        %242 = vadd.xlane.f32.xlu0 %v241
        %v243 = vpop.xlane.xlu0 %242
        %v244 = vadd.f32 %v225, %v226
        %245 = vadd.xlane.f32.xlu0 %v244
        %v246 = vpop.xlane.xlu0 %245
        %v247 = vadd.f32 %v227, %v228
        %248 = vadd.xlane.f32.xlu0 %v247
        %v249 = vpop.xlane.xlu0 %248
        %v250 = vadd.f32 %v229, %v230
        %251 = vadd.xlane.f32.xlu0 %v250
        %v252 = vpop.xlane.xlu0 %251
        %v253 = vadd.f32 %v231, %v232
        %254 = vadd.xlane.f32.xlu0 %v253
        %v255 = vpop.xlane.xlu0 %254
        %v256 = vadd.f32 %v233, %v234
        %257 = vadd.xlane.f32.xlu0 %v256
        %v258 = vpop.xlane.xlu0 %257
        %v259 = vadd.f32 %v235, %v236
        %260 = vadd.xlane.f32.xlu0 %v259
        %v261 = vpop.xlane.xlu0 %260
        %v262 = vadd.f32 %v237, %v238
        %263 = vadd.xlane.f32.xlu0 %v262
        %v264 = vpop.xlane.xlu0 %263
        %v265 = vrcp.pop 256.0
        %v266 = vmul.f32 256.0, %v265
        %v267 = vsub.f32 1.0, %v266
        %v268 = vmul.f32 %v265, %v267
        %v269 = vadd.f32 %v265, %v268
        %vm270 = vweird.f32 %v265
        %v271 = vsel %vm270, %v265, %v269
        %v272 = vmul.f32 %v243, %v271
        %v273 = vmul.f32 %v246, %v271
        %v274 = vmul.f32 %v249, %v271
        %v275 = vmul.f32 %v252, %v271
        %v276 = vmul.f32 %v255, %v271
        %v277 = vmul.f32 %v258, %v271
        %v278 = vmul.f32 %v261, %v271
        %v279 = vmul.f32 %v264, %v271
        %v280 = vsub.f32 %v223, %v272
        %v281 = vsub.f32 %v224, %v272
        %v282 = vsub.f32 %v225, %v273
        %v283 = vsub.f32 %v226, %v273
        %v284 = vsub.f32 %v227, %v274
        %v285 = vsub.f32 %v228, %v274
        %v286 = vsub.f32 %v229, %v275
        %v287 = vsub.f32 %v230, %v275
        %v288 = vsub.f32 %v231, %v276
        %v289 = vsub.f32 %v232, %v276
        %v290 = vsub.f32 %v233, %v277
        %v291 = vsub.f32 %v234, %v277
        %v292 = vsub.f32 %v235, %v278
        %v293 = vsub.f32 %v236, %v278
        %v294 = vsub.f32 %v237, %v279
        %v295 = vsub.f32 %v238, %v279
        %v296 = vmul.f32 %v280, %v280
        %v297 = vmul.f32 %v281, %v281
        %v298 = vmul.f32 %v282, %v282
        %v299 = vmul.f32 %v283, %v283
        %v300 = vmul.f32 %v284, %v284
        %v301 = vmul.f32 %v285, %v285
        %v302 = vmul.f32 %v286, %v286
        %v303 = vmul.f32 %v287, %v287
        %v304 = vmul.f32 %v288, %v288
        %v305 = vmul.f32 %v289, %v289
        %v306 = vmul.f32 %v290, %v290
        %v307 = vmul.f32 %v291, %v291
        %v308 = vmul.f32 %v292, %v292
        %v309 = vmul.f32 %v293, %v293
        %v310 = vmul.f32 %v294, %v294
        %v311 = vmul.f32 %v295, %v295
        %v312 = vadd.f32 %v296, %v297
        %313 = vadd.xlane.f32.xlu0 %v312
        %v314 = vpop.xlane.xlu0 %313
        %v315 = vadd.f32 %v298, %v299
        %316 = vadd.xlane.f32.xlu0 %v315
        %v317 = vpop.xlane.xlu0 %316
        %v318 = vadd.f32 %v300, %v301
        %319 = vadd.xlane.f32.xlu0 %v318
        %v320 = vpop.xlane.xlu0 %319
        %v321 = vadd.f32 %v302, %v303
        %322 = vadd.xlane.f32.xlu0 %v321
        %v323 = vpop.xlane.xlu0 %322
        %v324 = vadd.f32 %v304, %v305
        %325 = vadd.xlane.f32.xlu0 %v324
        %v326 = vpop.xlane.xlu0 %325
        %v327 = vadd.f32 %v306, %v307
        %328 = vadd.xlane.f32.xlu0 %v327
        %v329 = vpop.xlane.xlu0 %328
        %v330 = vadd.f32 %v308, %v309
        %331 = vadd.xlane.f32.xlu0 %v330
        %v332 = vpop.xlane.xlu0 %331
        %v333 = vadd.f32 %v310, %v311
        %334 = vadd.xlane.f32.xlu0 %v333
        %v335 = vpop.xlane.xlu0 %334
        %v336 = vmul.f32 %v314, 0.003921569
        %v337 = vmul.f32 %v317, 0.003921569
        %v338 = vmul.f32 %v320, 0.003921569
        %v339 = vmul.f32 %v323, 0.003921569
        %v340 = vmul.f32 %v326, 0.003921569
        %v341 = vmul.f32 %v329, 0.003921569
        %v342 = vmul.f32 %v332, 0.003921569
        %v343 = vmul.f32 %v335, 0.003921569
        %v344 = vrsqrt.pop %v336
        %v345 = vmul.f32 %v344, %v336
        %v346 = vmul.f32 %v345, %v344
        %v347 = vmul.f32 0.5, %v346
        %v348 = vsub.f32 1.5, %v347
        %v349 = vmul.f32 %v344, %v348
        %v350 = vmul.f32 %v336, %v349
        %vm351 = vcmp.eq.f32.partialorder %v336, inf
        %v352 = vsel %vm351, %v336, %v350
        %vm353 = vcmp.eq.f32.partialorder %v336, 0.0
        %v354 = vand.u32 %v336, 2147483648
        %v355 = vsel %vm353, %v354, %v352
        %v356 = vrsqrt.pop %v337
        %v357 = vmul.f32 %v356, %v337
        %v358 = vmul.f32 %v357, %v356
        %v359 = vmul.f32 0.5, %v358
        %v360 = vsub.f32 1.5, %v359
        %v361 = vmul.f32 %v356, %v360
        %v362 = vmul.f32 %v337, %v361
        %vm363 = vcmp.eq.f32.partialorder %v337, inf
        %v364 = vsel %vm363, %v337, %v362
        %vm365 = vcmp.eq.f32.partialorder %v337, 0.0
        %v366 = vand.u32 %v337, 2147483648
        %v367 = vsel %vm365, %v366, %v364
        %v368 = vrsqrt.pop %v338
        %v369 = vmul.f32 %v368, %v338
        %v370 = vmul.f32 %v369, %v368
        %v371 = vmul.f32 0.5, %v370
        %v372 = vsub.f32 1.5, %v371
        %v373 = vmul.f32 %v368, %v372
        %v374 = vmul.f32 %v338, %v373
        %vm375 = vcmp.eq.f32.partialorder %v338, inf
        %v376 = vsel %vm375, %v338, %v374
        %vm377 = vcmp.eq.f32.partialorder %v338, 0.0
        %v378 = vand.u32 %v338, 2147483648
        %v379 = vsel %vm377, %v378, %v376
        %v380 = vrsqrt.pop %v339
        %v381 = vmul.f32 %v380, %v339
        %v382 = vmul.f32 %v381, %v380
        %v383 = vmul.f32 0.5, %v382
        %v384 = vsub.f32 1.5, %v383
        %v385 = vmul.f32 %v380, %v384
        %v386 = vmul.f32 %v339, %v385
        %vm387 = vcmp.eq.f32.partialorder %v339, inf
        %v388 = vsel %vm387, %v339, %v386
        %vm389 = vcmp.eq.f32.partialorder %v339, 0.0
        %v390 = vand.u32 %v339, 2147483648
        %v391 = vsel %vm389, %v390, %v388
        %v392 = vrsqrt.pop %v340
        %v393 = vmul.f32 %v392, %v340
        %v394 = vmul.f32 %v393, %v392
        %v395 = vmul.f32 0.5, %v394
        %v396 = vsub.f32 1.5, %v395
        %v397 = vmul.f32 %v392, %v396
        %v398 = vmul.f32 %v340, %v397
        %vm399 = vcmp.eq.f32.partialorder %v340, inf
        %v400 = vsel %vm399, %v340, %v398
        %vm401 = vcmp.eq.f32.partialorder %v340, 0.0
        %v402 = vand.u32 %v340, 2147483648
        %v403 = vsel %vm401, %v402, %v400
        %v404 = vrsqrt.pop %v341
        %v405 = vmul.f32 %v404, %v341
        %v406 = vmul.f32 %v405, %v404
        %v407 = vmul.f32 0.5, %v406
        %v408 = vsub.f32 1.5, %v407
        %v409 = vmul.f32 %v404, %v408
        %v410 = vmul.f32 %v341, %v409
        %vm411 = vcmp.eq.f32.partialorder %v341, inf
        %v412 = vsel %vm411, %v341, %v410
        %vm413 = vcmp.eq.f32.partialorder %v341, 0.0
        %v414 = vand.u32 %v341, 2147483648
        %v415 = vsel %vm413, %v414, %v412
        %v416 = vrsqrt.pop %v342
        %v417 = vmul.f32 %v416, %v342
        %v418 = vmul.f32 %v417, %v416
        %v419 = vmul.f32 0.5, %v418
        %v420 = vsub.f32 1.5, %v419
        %v421 = vmul.f32 %v416, %v420
        %v422 = vmul.f32 %v342, %v421
        %vm423 = vcmp.eq.f32.partialorder %v342, inf
        %v424 = vsel %vm423, %v342, %v422
        %vm425 = vcmp.eq.f32.partialorder %v342, 0.0
        %v426 = vand.u32 %v342, 2147483648
        %v427 = vsel %vm425, %v426, %v424
        %v428 = vrsqrt.pop %v343
        %v429 = vmul.f32 %v428, %v343
        %v430 = vmul.f32 %v429, %v428
        %v431 = vmul.f32 0.5, %v430
        %v432 = vsub.f32 1.5, %v431
        %v433 = vmul.f32 %v428, %v432
        %v434 = vmul.f32 %v343, %v433
        %vm435 = vcmp.eq.f32.partialorder %v343, inf
        %v436 = vsel %vm435, %v343, %v434
        %vm437 = vcmp.eq.f32.partialorder %v343, 0.0
        %v438 = vand.u32 %v343, 2147483648
        %v439 = vsel %vm437, %v438, %v436
        %v440 = vadd.f32 %v355, 1e-06
        %v441 = vadd.f32 %v367, 1e-06
        %v442 = vadd.f32 %v379, 1e-06
        %v443 = vadd.f32 %v391, 1e-06
        %v444 = vadd.f32 %v403, 1e-06
        %v445 = vadd.f32 %v415, 1e-06
        %v446 = vadd.f32 %v427, 1e-06
        %v447 = vadd.f32 %v439, 1e-06
        %v448 = vrcp.pop %v440
        %v449 = vrcp.pop %v441
        %v450 = vrcp.pop %v442
        %v451 = vrcp.pop %v443
        %v452 = vrcp.pop %v444
        %v453 = vrcp.pop %v445
        %v454 = vrcp.pop %v446
        %v455 = vrcp.pop %v447
        %v456 = vmul.f32 %v440, %v448
        %v457 = vmul.f32 %v441, %v449
        %v458 = vmul.f32 %v442, %v450
        %v459 = vmul.f32 %v443, %v451
        %v460 = vmul.f32 %v444, %v452
        %v461 = vmul.f32 %v445, %v453
        %v462 = vmul.f32 %v446, %v454
        %v463 = vmul.f32 %v447, %v455
        %v464 = vsub.f32 2.0, %v456
        %v465 = vsub.f32 2.0, %v457
        %v466 = vsub.f32 2.0, %v458
        %v467 = vsub.f32 2.0, %v459
        %v468 = vsub.f32 2.0, %v460
        %v469 = vsub.f32 2.0, %v461
        %v470 = vsub.f32 2.0, %v462
        %v471 = vsub.f32 2.0, %v463
        %v472 = vmul.f32 %v448, %v464
        %v473 = vmul.f32 %v449, %v465
        %v474 = vmul.f32 %v450, %v466
        %v475 = vmul.f32 %v451, %v467
        %v476 = vmul.f32 %v452, %v468
        %v477 = vmul.f32 %v453, %v469
        %v478 = vmul.f32 %v454, %v470
        %v479 = vmul.f32 %v455, %v471
        %v480 = vmul.f32 %v280, %v472
        %v481 = vmul.f32 %v281, %v472
        %v482 = vmul.f32 %v282, %v473
        %v483 = vmul.f32 %v283, %v473
        %v484 = vmul.f32 %v284, %v474
        %v485 = vmul.f32 %v285, %v474
        %v486 = vmul.f32 %v286, %v475
        %v487 = vmul.f32 %v287, %v475
        %v488 = vmul.f32 %v288, %v476
        %v489 = vmul.f32 %v289, %v476
        %v490 = vmul.f32 %v290, %v477
        %v491 = vmul.f32 %v291, %v477
        %v492 = vmul.f32 %v292, %v478
        %v493 = vmul.f32 %v293, %v478
        %v494 = vmul.f32 %v294, %v479
        %v495 = vmul.f32 %v295, %v479
        %v497 = vperm.slane %v239, 0
        %v498 = vperm.slane %v239, 1
        %v501 = vmul.f32 %v497, %v480
        %v502 = vmul.f32 %v498, %v481
        %v503 = vmul.f32 %v497, %v482
        %v504 = vmul.f32 %v498, %v483
        %v505 = vmul.f32 %v497, %v484
        %v506 = vmul.f32 %v498, %v485
        %v507 = vmul.f32 %v497, %v486
        %v508 = vmul.f32 %v498, %v487
        %v509 = vmul.f32 %v497, %v488
        %v510 = vmul.f32 %v498, %v489
        %v511 = vmul.f32 %v497, %v490
        %v512 = vmul.f32 %v498, %v491
        %v513 = vmul.f32 %v497, %v492
        %v514 = vmul.f32 %v498, %v493
        %v515 = vmul.f32 %v497, %v494
        %v516 = vmul.f32 %v498, %v495
        %v518 = vperm.slane %v240, 0
        %v519 = vperm.slane %v240, 1
        %v522 = vadd.f32 %v501, %v518
        %v523 = vadd.f32 %v502, %v519
        %v524 = vadd.f32 %v503, %v518
        %v525 = vadd.f32 %v504, %v519
        %v526 = vadd.f32 %v505, %v518
        %v527 = vadd.f32 %v506, %v519
        %v528 = vadd.f32 %v507, %v518
        %v529 = vadd.f32 %v508, %v519
        %v530 = vadd.f32 %v509, %v518
        %v531 = vadd.f32 %v510, %v519
        %v532 = vadd.f32 %v511, %v518
        %v533 = vadd.f32 %v512, %v519
        %v534 = vadd.f32 %v513, %v518
        %v535 = vadd.f32 %v514, %v519
        %v536 = vadd.f32 %v515, %v518
        %v537 = vadd.f32 %v516, %v519
        %538 = vst [vmem:[%s220] sm:$0xff] %v522
        %539 = vst [vmem:[%s220 + $0x8] sm:$0xff] %v523
        %540 = vst [vmem:[%s220 + $0x10] sm:$0xff] %v524
        %541 = vst [vmem:[%s220 + $0x18] sm:$0xff] %v525
        %542 = vst [vmem:[%s220 + $0x20] sm:$0xff] %v526
        %543 = vst [vmem:[%s220 + $0x28] sm:$0xff] %v527
        %544 = vst [vmem:[%s220 + $0x30] sm:$0xff] %v528
        %545 = vst [vmem:[%s220 + $0x38] sm:$0xff] %v529
        %546 = vst [vmem:[%s220 + $0x40] sm:$0xff] %v530
        %547 = vst [vmem:[%s220 + $0x48] sm:$0xff] %v531
        %548 = vst [vmem:[%s220 + $0x50] sm:$0xff] %v532
        %549 = vst [vmem:[%s220 + $0x58] sm:$0xff] %v533
        %550 = vst [vmem:[%s220 + $0x60] sm:$0xff] %v534
        %551 = vst [vmem:[%s220 + $0x68] sm:$0xff] %v535
        %552 = vst [vmem:[%s220 + $0x70] sm:$0xff] %v536
        %553 = vst [vmem:[%s220 + $0x78] sm:$0xff] %v537
        %s554 = sand.u32 %s97, 1
        %s555 = scalar_lea.sflag [#allocation4], %s554
        %s556 = sand.u32 %s97, 1
        %s557 = smul.addr %s556, 128
        %s558 = scalar_lea.vmem [#allocation8], %s557
        // Predicated region
        $region45: #{tpu_custom_call.1} parent=31 // pred_check
          %p559 = pneg %p107
        $region46: #{tpu_custom_call.1} parent=31 // pred_check_branch
          %561 = sbr.rel (%p559) target = $region48
        $region47: #{tpu_custom_call.1} parent=31 // pred_region
          %s562 = smul.u32 8, %s21
          %564 = vsyncadd %s555, 0
          %s565 = smul.addr %s562, 2
          %s566 = smul.addr %s565, 8
          %s567 = scalar_lea.hbm %s3, %s566
          %s568 = sshll.u32 %s558, 4
          %s569 = int_to_ptr.vmem [resolvable:$true] %s568
          %s570 = sshll.u32 %s567, 4
          %s571 = int_to_ptr.hbm [resolvable:$true] %s570
          %576 = dma.vmem_to_hbm [thread:$0]  %s569, 2048, %s571, %s555, 256, 256, 16
        $region48: #{tpu_custom_call.1} parent=31 // pred_fallthru
          _
      $region32: #{tpu_custom_call.1} parent=5 // pred_fallthru
        _
      %p577 = scmp.le.s32.totalorder 2, %s16
      // Predicated region
      $region49: #{tpu_custom_call.1} parent=5 // pred_check
        %p578 = pneg %p577
      $region50: #{tpu_custom_call.1} parent=5 // pred_check_branch
        %580 = sbr.rel (%p578) target = $region52
      $region51: #{tpu_custom_call.1} parent=5 // pred_region
        %s581 = ssub.s32 %s16, 2
        // Predicated region
        $region53: #{tpu_custom_call.1} parent=51 // pred_check
          %p582 = pneg %p113
        $region54: #{tpu_custom_call.1} parent=51 // pred_check_branch
          %584 = sbr.rel (%p582) target = $region56
        $region55: #{tpu_custom_call.1} parent=51 // pred_region
          %s585 = sand.u32 %s98, 1
          %s586 = scalar_lea.sflag [#allocation4], %s585
          %s587 = sand.u32 %s98, 1
          %s588 = smul.addr %s587, 128
          %s589 = scalar_lea.vmem [#allocation8], %s588
          %591 = dma.done %s586, 2048
        $region56: #{tpu_custom_call.1} parent=51 // pred_fallthru
          _
      $region52: #{tpu_custom_call.1} parent=5 // pred_fallthru
        _
    $region6: #{tpu_custom_call.1} parent=1 // loop_footer
      %s20 = sadd.s32 1, %s16
    $region7: #{tpu_custom_call.1} parent=1 // loop_footer_branch
      %15 = sbr.rel target = $region3
    $region8: #{tpu_custom_call.1} parent=1 // loop_exit
      _
    %592 = vsyncpa [#allocation3], 1
    %s593 = scalar_lea.sflag [#allocation3], 1
    %594 = vsyncpa %s593, 1
    %595 = vsyncpa [#allocation6], 1
    %596 = vsyncpa [#allocation4], 1
    %s597 = scalar_lea.sflag [#allocation4], 1
    %598 = vsyncpa %s597, 1

</llo_original>
